<compile_context>
chip_gen: v6e
topology: v6e:2x2x1
jax: 0.10.0
libtpu: 0.0.40
codegen_flags: <defaults>
</compile_context>

<pallas_src>
import functools

import jax
import jax.numpy as jnp
import numpy as np
from jax.experimental import pallas as pl
from jax.experimental.pallas import tpu as pltpu


# ----------------------- parameter setup (plain JAX glue) -----------------------

def initialize_coeffs(init, grid_tensor):
    """c[k] = f[k] at each knot (B1 splines are interpolators)."""
    if init == 'identity':
        return grid_tensor
    elif init == 'zero':
        return grid_tensor * 0.0
    elif init == 'relu':
        return jax.nn.relu(grid_tensor)
    raise ValueError("init must be in ['identity', 'relu', 'zero'].")


def monotonic_clipping(cs):
    """Project spline coefficients so the spline is monotone increasing."""
    new_slopes = jnp.clip(cs[:, 1:] - cs[:, :-1], 0.0, None)
    new_slopes = new_slopes.at[:, 0].set(0.0)
    new_slopes = new_slopes.at[:, -1].set(0.0)
    new_cs = jnp.zeros_like(cs)
    new_cs = new_cs.at[:, 1:].set(jnp.cumsum(new_slopes, axis=1))
    new_cs = new_cs + (-new_cs[:, cs.shape[1] // 2])[:, None]
    return new_cs


# ------------------------------- Pallas kernel ----------------------------------

def _spline_kernel(coeff_ref, x_ref, o_ref, *, size, even, inv_grid, half_grid):
    """coeff_ref: (C, size) f32 in SMEM; x_ref / o_ref: (sub, 128) f32 in VMEM."""
    c = pl.program_id(1)                        # channel handled by this block
    lo = -(size // 2)                           # lowest knot index (grid units)
    hi = (size // 2 - 2) if even else (size // 2 - 1)

    # Single scale by 1/grid (static float); clamp in grid units; no int cast.
    xg = x_ref[...] * inv_grid                  # (sub, 128)
    if even:
        xg = xg - 0.5
    floored = jnp.floor(jnp.clip(xg, float(lo), float(hi)))
    frac = xg - floored                         # may be <0 or >1: linear tails

    # Piecewise-linear lookup: exactly one knot matches per element, so seed the
    # accumulator with knot 0 and overwrite via a single select per later knot.
    # coeff[c, k] / slopes are SMEM scalar reads -> free splats on the VPU.
    base0 = coeff_ref[c, 0]
    acc = base0 + frac * (coeff_ref[c, 1] - base0)
    for k in range(1, size - 1):
        base = coeff_ref[c, k]
        slope = coeff_ref[c, k + 1] - base
        acc = jnp.where(floored == float(lo + k), base + frac * slope, acc)

    if even:
        acc = acc + half_grid
    o_ref[...] = acc.astype(o_ref.dtype)


def linear_spline_forward(x_nchw, proj_coeff, *, size, even, grid, max_sub=64):
    """Forward pass of LinearSpline (mode='conv') on a 4-D NCHW input."""
    N, C, H, W = x_nchw.shape
    L = H * W
    # Contiguous reshape (free): NCHW -> (N, C, H*W).  No transposes.
    x3 = x_nchw.reshape(N, C, L).astype(jnp.float32)

    rows = pl.cdiv(L, 128)                       # 128-lane rows per (n, c)
    sub = min(max_sub, ((rows + 7) // 8) * 8)    # sublane block, multiple of 8
    rows_p = ((rows + sub - 1) // sub) * sub
    Lp = rows_p * 128
    if Lp != L:
        # Single pad copy only when H*W is not a multiple of sub*128; padded
        # values go through the spline and are sliced away afterwards.
        x3 = jnp.pad(x3, ((0, 0), (0, 0), (0, Lp - L)))
    x4 = x3.reshape(N, C, rows_p, 128)

    kernel = functools.partial(_spline_kernel, size=size, even=even,
                               inv_grid=1.0 / grid, half_grid=grid * 0.5)
    blk = pl.BlockSpec((None, None, sub, 128), lambda n, c, j: (n, c, j, 0))

    out4 = pl.pallas_call(
        kernel,
        out_shape=jax.ShapeDtypeStruct((N, C, rows_p, 128), jnp.float32),
        grid=(N, C, rows_p // sub),
        in_specs=[
            pl.BlockSpec(memory_space=pltpu.MemorySpace.SMEM),  # (C, size) coeffs
            blk,                                                # activation tile
        ],
        out_specs=blk,
        compiler_params=pltpu.CompilerParams(
            dimension_semantics=("parallel", "parallel", "parallel")),
    )(proj_coeff.astype(jnp.float32), x4)

    out = out4.reshape(N, C, Lp)
    if Lp != L:
        out = out[:, :, :L]
    return out.reshape(N, C, H, W)


# -------------------------- pure-JAX reference (check) --------------------------

def reference_forward(x, coefficients_vect, grid, zero_knot_indexes, size, even):
    """Mirrors torch LinearSpline_Func.forward for a 4-D NCHW input."""
    max_range = grid * (size // 2 - 1)
    if even:
        x = x - grid / 2
        max_range = grid * (size // 2 - 2)
    x_clamped = jnp.clip(x, -(grid * (size // 2)), max_range)
    floored_x = jnp.floor(x_clamped / grid)
    fracs = x / grid - floored_x
    indexes = (zero_knot_indexes.reshape(1, -1, 1, 1) + floored_x).astype(jnp.int32)
    out = coefficients_vect[indexes + 1] * fracs + coefficients_vect[indexes] * (1 - fracs)
    if even:
        out = out + grid / 2
    return out


# ------------------------------------ main ---------------------------------------

if __name__ == "__main__":
    def build_and_check(*, N, C, H, W, size, range_, init, monotonic,
                        x_scale, x_clip, seed):
        even = (size % 2 == 0)
        grid = 2.0 * range_ / float(size - 1)
        zero_knot_indexes = jnp.arange(C) * size + size // 2

        # Deterministic parameter init following the module's __init__ (plus a
        # small deterministic perturbation so each channel's spline is distinct).
        grid_tensor = jnp.broadcast_to(
            jnp.linspace(-range_, range_, size), (C, size)).astype(jnp.float32)
        coefficients = initialize_coeffs(init, grid_tensor)
        key = jax.random.PRNGKey(seed)
        k_coeff, k_x = jax.random.split(key)
        coefficients = coefficients + 0.05 * jax.random.normal(
            k_coeff, coefficients.shape, jnp.float32)
        proj_coeff = monotonic_clipping(coefficients) if monotonic else coefficients

        x = x_scale * jax.random.normal(k_x, (N, C, H, W), jnp.float32)
        if x_clip is not None:
            x = jnp.clip(x, -x_clip, x_clip)

        out = linear_spline_forward(x, proj_coeff, size=size, even=even, grid=grid)
        out = jax.block_until_ready(out)
        ref = reference_forward(x, proj_coeff.reshape(-1), grid,
                                zero_knot_indexes, size, even)
        np.testing.assert_allclose(np.asarray(out), np.asarray(ref),
                                   rtol=1e-5, atol=1e-5)

    # Case 1: the module's default 'conv' config — odd size, monotonic
    # constraint, inputs exceeding [-range_, range_] to exercise the linear tails.
    build_and_check(N=2, C=4, H=16, W=16, size=21, range_=4.0, init="relu",
                    monotonic=True, x_scale=3.0, x_clip=None, seed=0)
    # Case 2: even-size spline path (x shift + grid/2 epilogue), interior inputs.
    build_and_check(N=1, C=3, H=8, W=8, size=20, range_=4.0, init="identity",
                    monotonic=False, x_scale=1.0, x_clip=3.0, seed=1)

    print("KERNEL_OK")
</pallas_src>

<mosaic_0001>
module attributes {stable_mosaic.version = 11 : i64} {
  func.func @_spline_kernel(%arg0: i32, %arg1: i32, %arg2: i32, %arg3: memref<4x21xf32, #tpu.memory_space<smem>>, %arg4: memref<1x1x8x128xf32, #tpu.memory_space<vmem>>, %arg5: memref<1x1x8x128xf32, #tpu.memory_space<vmem>>) attributes {dimension_semantics = [#tpu.dimension_semantics<parallel>, #tpu.dimension_semantics<parallel>, #tpu.dimension_semantics<parallel>], iteration_bounds = array<i64: 2, 4, 1>, scalar_prefetch = 0 : i64, scratch_operands = 0 : i64, tpu.core_type = #tpu.core_type<tc>, window_params = [{transform_indices = @transform_0, window_bounds = array<i64: 4, 21>}, {transform_indices = @transform_1, window_bounds = array<i64: 1, 1, 8, 128>}, {transform_indices = @transform_2, window_bounds = array<i64: 1, 1, 8, 128>}]} {
    %c0 = arith.constant 0 : index
    %c0_0 = arith.constant 0 : index
    %c0_1 = arith.constant 0 : index
    %c0_2 = arith.constant 0 : index
    %0 = vector.load %arg4[%c0, %c0_0, %c0_1, %c0_2] : memref<1x1x8x128xf32, #tpu.memory_space<vmem>>, vector<1x1x8x128xf32>
    %1 = vector.shape_cast %0 : vector<1x1x8x128xf32> to vector<8x128xf32>
    %cst = arith.constant 2.500000e+00 : f32
    %2 = vector.broadcast %cst : f32 to vector<8x128xf32>
    %3 = arith.mulf %1, %2 : vector<8x128xf32>
    %cst_3 = arith.constant -1.000000e+01 : f32
    %cst_4 = arith.constant 9.000000e+00 : f32
    %4 = vector.broadcast %cst_3 : f32 to vector<8x128xf32>
    %5 = arith.maximumf %4, %3 : vector<8x128xf32>
    %6 = vector.broadcast %cst_4 : f32 to vector<8x128xf32>
    %7 = arith.minimumf %6, %5 : vector<8x128xf32>
    %8 = math.floor %7 : vector<8x128xf32>
    %9 = arith.subf %3, %8 : vector<8x128xf32>
    %10 = arith.index_cast %arg1 : i32 to index
    %c0_5 = arith.constant 0 : index
    %11 = memref.load %arg3[%10, %c0_5] : memref<4x21xf32, #tpu.memory_space<smem>>
    %12 = arith.index_cast %arg1 : i32 to index
    %c1 = arith.constant 1 : index
    %13 = memref.load %arg3[%12, %c1] : memref<4x21xf32, #tpu.memory_space<smem>>
    %14 = arith.subf %13, %11 : f32
    %15 = vector.broadcast %14 : f32 to vector<8x128xf32>
    %16 = arith.mulf %9, %15 : vector<8x128xf32>
    %17 = vector.broadcast %11 : f32 to vector<8x128xf32>
    %18 = arith.addf %17, %16 : vector<8x128xf32>
    %19 = arith.index_cast %arg1 : i32 to index
    %c1_6 = arith.constant 1 : index
    %20 = memref.load %arg3[%19, %c1_6] : memref<4x21xf32, #tpu.memory_space<smem>>
    %21 = arith.index_cast %arg1 : i32 to index
    %c2 = arith.constant 2 : index
    %22 = memref.load %arg3[%21, %c2] : memref<4x21xf32, #tpu.memory_space<smem>>
    %23 = arith.subf %22, %20 : f32
    %cst_7 = arith.constant -9.000000e+00 : f32
    %24 = vector.broadcast %cst_7 : f32 to vector<8x128xf32>
    %25 = arith.cmpf oeq, %8, %24 : vector<8x128xf32>
    %26 = vector.broadcast %23 : f32 to vector<8x128xf32>
    %27 = arith.mulf %9, %26 : vector<8x128xf32>
    %28 = vector.broadcast %20 : f32 to vector<8x128xf32>
    %29 = arith.addf %28, %27 : vector<8x128xf32>
    %30 = arith.select %25, %29, %18 : vector<8x128xi1>, vector<8x128xf32>
    %31 = arith.index_cast %arg1 : i32 to index
    %c2_8 = arith.constant 2 : index
    %32 = memref.load %arg3[%31, %c2_8] : memref<4x21xf32, #tpu.memory_space<smem>>
    %33 = arith.index_cast %arg1 : i32 to index
    %c3 = arith.constant 3 : index
    %34 = memref.load %arg3[%33, %c3] : memref<4x21xf32, #tpu.memory_space<smem>>
    %35 = arith.subf %34, %32 : f32
    %cst_9 = arith.constant -8.000000e+00 : f32
    %36 = vector.broadcast %cst_9 : f32 to vector<8x128xf32>
    %37 = arith.cmpf oeq, %8, %36 : vector<8x128xf32>
    %38 = vector.broadcast %35 : f32 to vector<8x128xf32>
    %39 = arith.mulf %9, %38 : vector<8x128xf32>
    %40 = vector.broadcast %32 : f32 to vector<8x128xf32>
    %41 = arith.addf %40, %39 : vector<8x128xf32>
    %42 = arith.select %37, %41, %30 : vector<8x128xi1>, vector<8x128xf32>
    %43 = arith.index_cast %arg1 : i32 to index
    %c3_10 = arith.constant 3 : index
    %44 = memref.load %arg3[%43, %c3_10] : memref<4x21xf32, #tpu.memory_space<smem>>
    %45 = arith.index_cast %arg1 : i32 to index
    %c4 = arith.constant 4 : index
    %46 = memref.load %arg3[%45, %c4] : memref<4x21xf32, #tpu.memory_space<smem>>
    %47 = arith.subf %46, %44 : f32
    %cst_11 = arith.constant -7.000000e+00 : f32
    %48 = vector.broadcast %cst_11 : f32 to vector<8x128xf32>
    %49 = arith.cmpf oeq, %8, %48 : vector<8x128xf32>
    %50 = vector.broadcast %47 : f32 to vector<8x128xf32>
    %51 = arith.mulf %9, %50 : vector<8x128xf32>
    %52 = vector.broadcast %44 : f32 to vector<8x128xf32>
    %53 = arith.addf %52, %51 : vector<8x128xf32>
    %54 = arith.select %49, %53, %42 : vector<8x128xi1>, vector<8x128xf32>
    %55 = arith.index_cast %arg1 : i32 to index
    %c4_12 = arith.constant 4 : index
    %56 = memref.load %arg3[%55, %c4_12] : memref<4x21xf32, #tpu.memory_space<smem>>
    %57 = arith.index_cast %arg1 : i32 to index
    %c5 = arith.constant 5 : index
    %58 = memref.load %arg3[%57, %c5] : memref<4x21xf32, #tpu.memory_space<smem>>
    %59 = arith.subf %58, %56 : f32
    %cst_13 = arith.constant -6.000000e+00 : f32
    %60 = vector.broadcast %cst_13 : f32 to vector<8x128xf32>
    %61 = arith.cmpf oeq, %8, %60 : vector<8x128xf32>
    %62 = vector.broadcast %59 : f32 to vector<8x128xf32>
    %63 = arith.mulf %9, %62 : vector<8x128xf32>
    %64 = vector.broadcast %56 : f32 to vector<8x128xf32>
    %65 = arith.addf %64, %63 : vector<8x128xf32>
    %66 = arith.select %61, %65, %54 : vector<8x128xi1>, vector<8x128xf32>
    %67 = arith.index_cast %arg1 : i32 to index
    %c5_14 = arith.constant 5 : index
    %68 = memref.load %arg3[%67, %c5_14] : memref<4x21xf32, #tpu.memory_space<smem>>
    %69 = arith.index_cast %arg1 : i32 to index
    %c6 = arith.constant 6 : index
    %70 = memref.load %arg3[%69, %c6] : memref<4x21xf32, #tpu.memory_space<smem>>
    %71 = arith.subf %70, %68 : f32
    %cst_15 = arith.constant -5.000000e+00 : f32
    %72 = vector.broadcast %cst_15 : f32 to vector<8x128xf32>
    %73 = arith.cmpf oeq, %8, %72 : vector<8x128xf32>
    %74 = vector.broadcast %71 : f32 to vector<8x128xf32>
    %75 = arith.mulf %9, %74 : vector<8x128xf32>
    %76 = vector.broadcast %68 : f32 to vector<8x128xf32>
    %77 = arith.addf %76, %75 : vector<8x128xf32>
    %78 = arith.select %73, %77, %66 : vector<8x128xi1>, vector<8x128xf32>
    %79 = arith.index_cast %arg1 : i32 to index
    %c6_16 = arith.constant 6 : index
    %80 = memref.load %arg3[%79, %c6_16] : memref<4x21xf32, #tpu.memory_space<smem>>
    %81 = arith.index_cast %arg1 : i32 to index
    %c7 = arith.constant 7 : index
    %82 = memref.load %arg3[%81, %c7] : memref<4x21xf32, #tpu.memory_space<smem>>
    %83 = arith.subf %82, %80 : f32
    %cst_17 = arith.constant -4.000000e+00 : f32
    %84 = vector.broadcast %cst_17 : f32 to vector<8x128xf32>
    %85 = arith.cmpf oeq, %8, %84 : vector<8x128xf32>
    %86 = vector.broadcast %83 : f32 to vector<8x128xf32>
    %87 = arith.mulf %9, %86 : vector<8x128xf32>
    %88 = vector.broadcast %80 : f32 to vector<8x128xf32>
    %89 = arith.addf %88, %87 : vector<8x128xf32>
    %90 = arith.select %85, %89, %78 : vector<8x128xi1>, vector<8x128xf32>
    %91 = arith.index_cast %arg1 : i32 to index
    %c7_18 = arith.constant 7 : index
    %92 = memref.load %arg3[%91, %c7_18] : memref<4x21xf32, #tpu.memory_space<smem>>
    %93 = arith.index_cast %arg1 : i32 to index
    %c8 = arith.constant 8 : index
    %94 = memref.load %arg3[%93, %c8] : memref<4x21xf32, #tpu.memory_space<smem>>
    %95 = arith.subf %94, %92 : f32
    %cst_19 = arith.constant -3.000000e+00 : f32
    %96 = vector.broadcast %cst_19 : f32 to vector<8x128xf32>
    %97 = arith.cmpf oeq, %8, %96 : vector<8x128xf32>
    %98 = vector.broadcast %95 : f32 to vector<8x128xf32>
    %99 = arith.mulf %9, %98 : vector<8x128xf32>
    %100 = vector.broadcast %92 : f32 to vector<8x128xf32>
    %101 = arith.addf %100, %99 : vector<8x128xf32>
    %102 = arith.select %97, %101, %90 : vector<8x128xi1>, vector<8x128xf32>
    %103 = arith.index_cast %arg1 : i32 to index
    %c8_20 = arith.constant 8 : index
    %104 = memref.load %arg3[%103, %c8_20] : memref<4x21xf32, #tpu.memory_space<smem>>
    %105 = arith.index_cast %arg1 : i32 to index
    %c9 = arith.constant 9 : index
    %106 = memref.load %arg3[%105, %c9] : memref<4x21xf32, #tpu.memory_space<smem>>
    %107 = arith.subf %106, %104 : f32
    %cst_21 = arith.constant -2.000000e+00 : f32
    %108 = vector.broadcast %cst_21 : f32 to vector<8x128xf32>
    %109 = arith.cmpf oeq, %8, %108 : vector<8x128xf32>
    %110 = vector.broadcast %107 : f32 to vector<8x128xf32>
    %111 = arith.mulf %9, %110 : vector<8x128xf32>
    %112 = vector.broadcast %104 : f32 to vector<8x128xf32>
    %113 = arith.addf %112, %111 : vector<8x128xf32>
    %114 = arith.select %109, %113, %102 : vector<8x128xi1>, vector<8x128xf32>
    %115 = arith.index_cast %arg1 : i32 to index
    %c9_22 = arith.constant 9 : index
    %116 = memref.load %arg3[%115, %c9_22] : memref<4x21xf32, #tpu.memory_space<smem>>
    %117 = arith.index_cast %arg1 : i32 to index
    %c10 = arith.constant 10 : index
    %118 = memref.load %arg3[%117, %c10] : memref<4x21xf32, #tpu.memory_space<smem>>
    %119 = arith.subf %118, %116 : f32
    %cst_23 = arith.constant -1.000000e+00 : f32
    %120 = vector.broadcast %cst_23 : f32 to vector<8x128xf32>
    %121 = arith.cmpf oeq, %8, %120 : vector<8x128xf32>
    %122 = vector.broadcast %119 : f32 to vector<8x128xf32>
    %123 = arith.mulf %9, %122 : vector<8x128xf32>
    %124 = vector.broadcast %116 : f32 to vector<8x128xf32>
    %125 = arith.addf %124, %123 : vector<8x128xf32>
    %126 = arith.select %121, %125, %114 : vector<8x128xi1>, vector<8x128xf32>
    %127 = arith.index_cast %arg1 : i32 to index
    %c10_24 = arith.constant 10 : index
    %128 = memref.load %arg3[%127, %c10_24] : memref<4x21xf32, #tpu.memory_space<smem>>
    %129 = arith.index_cast %arg1 : i32 to index
    %c11 = arith.constant 11 : index
    %130 = memref.load %arg3[%129, %c11] : memref<4x21xf32, #tpu.memory_space<smem>>
    %131 = arith.subf %130, %128 : f32
    %cst_25 = arith.constant 0.000000e+00 : f32
    %132 = vector.broadcast %cst_25 : f32 to vector<8x128xf32>
    %133 = arith.cmpf oeq, %8, %132 : vector<8x128xf32>
    %134 = vector.broadcast %131 : f32 to vector<8x128xf32>
    %135 = arith.mulf %9, %134 : vector<8x128xf32>
    %136 = vector.broadcast %128 : f32 to vector<8x128xf32>
    %137 = arith.addf %136, %135 : vector<8x128xf32>
    %138 = arith.select %133, %137, %126 : vector<8x128xi1>, vector<8x128xf32>
    %139 = arith.index_cast %arg1 : i32 to index
    %c11_26 = arith.constant 11 : index
    %140 = memref.load %arg3[%139, %c11_26] : memref<4x21xf32, #tpu.memory_space<smem>>
    %141 = arith.index_cast %arg1 : i32 to index
    %c12 = arith.constant 12 : index
    %142 = memref.load %arg3[%141, %c12] : memref<4x21xf32, #tpu.memory_space<smem>>
    %143 = arith.subf %142, %140 : f32
    %cst_27 = arith.constant 1.000000e+00 : f32
    %144 = vector.broadcast %cst_27 : f32 to vector<8x128xf32>
    %145 = arith.cmpf oeq, %8, %144 : vector<8x128xf32>
    %146 = vector.broadcast %143 : f32 to vector<8x128xf32>
    %147 = arith.mulf %9, %146 : vector<8x128xf32>
    %148 = vector.broadcast %140 : f32 to vector<8x128xf32>
    %149 = arith.addf %148, %147 : vector<8x128xf32>
    %150 = arith.select %145, %149, %138 : vector<8x128xi1>, vector<8x128xf32>
    %151 = arith.index_cast %arg1 : i32 to index
    %c12_28 = arith.constant 12 : index
    %152 = memref.load %arg3[%151, %c12_28] : memref<4x21xf32, #tpu.memory_space<smem>>
    %153 = arith.index_cast %arg1 : i32 to index
    %c13 = arith.constant 13 : index
    %154 = memref.load %arg3[%153, %c13] : memref<4x21xf32, #tpu.memory_space<smem>>
    %155 = arith.subf %154, %152 : f32
    %cst_29 = arith.constant 2.000000e+00 : f32
    %156 = vector.broadcast %cst_29 : f32 to vector<8x128xf32>
    %157 = arith.cmpf oeq, %8, %156 : vector<8x128xf32>
    %158 = vector.broadcast %155 : f32 to vector<8x128xf32>
    %159 = arith.mulf %9, %158 : vector<8x128xf32>
    %160 = vector.broadcast %152 : f32 to vector<8x128xf32>
    %161 = arith.addf %160, %159 : vector<8x128xf32>
    %162 = arith.select %157, %161, %150 : vector<8x128xi1>, vector<8x128xf32>
    %163 = arith.index_cast %arg1 : i32 to index
    %c13_30 = arith.constant 13 : index
    %164 = memref.load %arg3[%163, %c13_30] : memref<4x21xf32, #tpu.memory_space<smem>>
    %165 = arith.index_cast %arg1 : i32 to index
    %c14 = arith.constant 14 : index
    %166 = memref.load %arg3[%165, %c14] : memref<4x21xf32, #tpu.memory_space<smem>>
    %167 = arith.subf %166, %164 : f32
    %cst_31 = arith.constant 3.000000e+00 : f32
    %168 = vector.broadcast %cst_31 : f32 to vector<8x128xf32>
    %169 = arith.cmpf oeq, %8, %168 : vector<8x128xf32>
    %170 = vector.broadcast %167 : f32 to vector<8x128xf32>
    %171 = arith.mulf %9, %170 : vector<8x128xf32>
    %172 = vector.broadcast %164 : f32 to vector<8x128xf32>
    %173 = arith.addf %172, %171 : vector<8x128xf32>
    %174 = arith.select %169, %173, %162 : vector<8x128xi1>, vector<8x128xf32>
    %175 = arith.index_cast %arg1 : i32 to index
    %c14_32 = arith.constant 14 : index
    %176 = memref.load %arg3[%175, %c14_32] : memref<4x21xf32, #tpu.memory_space<smem>>
    %177 = arith.index_cast %arg1 : i32 to index
    %c15 = arith.constant 15 : index
    %178 = memref.load %arg3[%177, %c15] : memref<4x21xf32, #tpu.memory_space<smem>>
    %179 = arith.subf %178, %176 : f32
    %cst_33 = arith.constant 4.000000e+00 : f32
    %180 = vector.broadcast %cst_33 : f32 to vector<8x128xf32>
    %181 = arith.cmpf oeq, %8, %180 : vector<8x128xf32>
    %182 = vector.broadcast %179 : f32 to vector<8x128xf32>
    %183 = arith.mulf %9, %182 : vector<8x128xf32>
    %184 = vector.broadcast %176 : f32 to vector<8x128xf32>
    %185 = arith.addf %184, %183 : vector<8x128xf32>
    %186 = arith.select %181, %185, %174 : vector<8x128xi1>, vector<8x128xf32>
    %187 = arith.index_cast %arg1 : i32 to index
    %c15_34 = arith.constant 15 : index
    %188 = memref.load %arg3[%187, %c15_34] : memref<4x21xf32, #tpu.memory_space<smem>>
    %189 = arith.index_cast %arg1 : i32 to index
    %c16 = arith.constant 16 : index
    %190 = memref.load %arg3[%189, %c16] : memref<4x21xf32, #tpu.memory_space<smem>>
    %191 = arith.subf %190, %188 : f32
    %cst_35 = arith.constant 5.000000e+00 : f32
    %192 = vector.broadcast %cst_35 : f32 to vector<8x128xf32>
    %193 = arith.cmpf oeq, %8, %192 : vector<8x128xf32>
    %194 = vector.broadcast %191 : f32 to vector<8x128xf32>
    %195 = arith.mulf %9, %194 : vector<8x128xf32>
    %196 = vector.broadcast %188 : f32 to vector<8x128xf32>
    %197 = arith.addf %196, %195 : vector<8x128xf32>
    %198 = arith.select %193, %197, %186 : vector<8x128xi1>, vector<8x128xf32>
    %199 = arith.index_cast %arg1 : i32 to index
    %c16_36 = arith.constant 16 : index
    %200 = memref.load %arg3[%199, %c16_36] : memref<4x21xf32, #tpu.memory_space<smem>>
    %201 = arith.index_cast %arg1 : i32 to index
    %c17 = arith.constant 17 : index
    %202 = memref.load %arg3[%201, %c17] : memref<4x21xf32, #tpu.memory_space<smem>>
    %203 = arith.subf %202, %200 : f32
    %cst_37 = arith.constant 6.000000e+00 : f32
    %204 = vector.broadcast %cst_37 : f32 to vector<8x128xf32>
    %205 = arith.cmpf oeq, %8, %204 : vector<8x128xf32>
    %206 = vector.broadcast %203 : f32 to vector<8x128xf32>
    %207 = arith.mulf %9, %206 : vector<8x128xf32>
    %208 = vector.broadcast %200 : f32 to vector<8x128xf32>
    %209 = arith.addf %208, %207 : vector<8x128xf32>
    %210 = arith.select %205, %209, %198 : vector<8x128xi1>, vector<8x128xf32>
    %211 = arith.index_cast %arg1 : i32 to index
    %c17_38 = arith.constant 17 : index
    %212 = memref.load %arg3[%211, %c17_38] : memref<4x21xf32, #tpu.memory_space<smem>>
    %213 = arith.index_cast %arg1 : i32 to index
    %c18 = arith.constant 18 : index
    %214 = memref.load %arg3[%213, %c18] : memref<4x21xf32, #tpu.memory_space<smem>>
    %215 = arith.subf %214, %212 : f32
    %cst_39 = arith.constant 7.000000e+00 : f32
    %216 = vector.broadcast %cst_39 : f32 to vector<8x128xf32>
    %217 = arith.cmpf oeq, %8, %216 : vector<8x128xf32>
    %218 = vector.broadcast %215 : f32 to vector<8x128xf32>
    %219 = arith.mulf %9, %218 : vector<8x128xf32>
    %220 = vector.broadcast %212 : f32 to vector<8x128xf32>
    %221 = arith.addf %220, %219 : vector<8x128xf32>
    %222 = arith.select %217, %221, %210 : vector<8x128xi1>, vector<8x128xf32>
    %223 = arith.index_cast %arg1 : i32 to index
    %c18_40 = arith.constant 18 : index
    %224 = memref.load %arg3[%223, %c18_40] : memref<4x21xf32, #tpu.memory_space<smem>>
    %225 = arith.index_cast %arg1 : i32 to index
    %c19 = arith.constant 19 : index
    %226 = memref.load %arg3[%225, %c19] : memref<4x21xf32, #tpu.memory_space<smem>>
    %227 = arith.subf %226, %224 : f32
    %cst_41 = arith.constant 8.000000e+00 : f32
    %228 = vector.broadcast %cst_41 : f32 to vector<8x128xf32>
    %229 = arith.cmpf oeq, %8, %228 : vector<8x128xf32>
    %230 = vector.broadcast %227 : f32 to vector<8x128xf32>
    %231 = arith.mulf %9, %230 : vector<8x128xf32>
    %232 = vector.broadcast %224 : f32 to vector<8x128xf32>
    %233 = arith.addf %232, %231 : vector<8x128xf32>
    %234 = arith.select %229, %233, %222 : vector<8x128xi1>, vector<8x128xf32>
    %235 = arith.index_cast %arg1 : i32 to index
    %c19_42 = arith.constant 19 : index
    %236 = memref.load %arg3[%235, %c19_42] : memref<4x21xf32, #tpu.memory_space<smem>>
    %237 = arith.index_cast %arg1 : i32 to index
    %c20 = arith.constant 20 : index
    %238 = memref.load %arg3[%237, %c20] : memref<4x21xf32, #tpu.memory_space<smem>>
    %239 = arith.subf %238, %236 : f32
    %cst_43 = arith.constant 9.000000e+00 : f32
    %240 = vector.broadcast %cst_43 : f32 to vector<8x128xf32>
    %241 = arith.cmpf oeq, %8, %240 : vector<8x128xf32>
    %242 = vector.broadcast %239 : f32 to vector<8x128xf32>
    %243 = arith.mulf %9, %242 : vector<8x128xf32>
    %244 = vector.broadcast %236 : f32 to vector<8x128xf32>
    %245 = arith.addf %244, %243 : vector<8x128xf32>
    %246 = arith.select %241, %245, %234 : vector<8x128xi1>, vector<8x128xf32>
    %c0_44 = arith.constant 0 : index
    %c0_45 = arith.constant 0 : index
    %c0_46 = arith.constant 0 : index
    %c0_47 = arith.constant 0 : index
    %247 = vector.load %arg5[%c0_44, %c0_45, %c0_46, %c0_47] : memref<1x1x8x128xf32, #tpu.memory_space<vmem>>, vector<1x1x8x128xf32>
    %248 = vector.shape_cast %247 : vector<1x1x8x128xf32> to vector<8x128xf32>
    %249 = vector.shape_cast %246 : vector<8x128xf32> to vector<1x1x8x128xf32>
    tpu.vector_store %arg5[%c0_44, %c0_45, %c0_46, %c0_47], %249 {strides = array<i32>} : memref<1x1x8x128xf32, #tpu.memory_space<vmem>>, vector<1x1x8x128xf32>,
    return
  }
  func.func @transform_0(%arg0: i32, %arg1: i32, %arg2: i32) -> (i32, i32) {
    %c0_i32 = arith.constant 0 : i32
    %c0_i32_0 = arith.constant 0 : i32
    %c0_i32_1 = arith.constant 0 : i32
    return %c0_i32, %c0_i32_0 : i32, i32
  }
  func.func @transform_1(%arg0: i32, %arg1: i32, %arg2: i32) -> (i32, i32, i32, i32) {
    %c0_i32 = arith.constant 0 : i32
    %c0_i32_0 = arith.constant 0 : i32
    return %arg0, %arg1, %arg2, %c0_i32 : i32, i32, i32, i32
  }
  func.func @transform_2(%arg0: i32, %arg1: i32, %arg2: i32) -> (i32, i32, i32, i32) {
    %c0_i32 = arith.constant 0 : i32
    %c0_i32_0 = arith.constant 0 : i32
    return %arg0, %arg1, %arg2, %c0_i32 : i32, i32, i32, i32
  }
}

</mosaic_0001>

<llo_original>
// kernel: tpu_custom_call.1
$region0: #{tpu_custom_call.1}
  #allocation0 [shape = 'u32[]', space=smem, size = 0x4, offset = 0x4, fixed_abs, tag = 'smem constant byte address 0x4 - core index']
  #allocation1 [shape = 'u32[144,128]{1,0:T(1,128)}', space=vmem, size = 0x12000, scoped, tag = 'internal scratch']
  %s0 = inlined_call_operand.hbm [shape: f32[4,21], index: 0, kind: input, shape index: {}]
  %s1 = inlined_call_operand.hbm [shape: f32[2,4,8,128], index: 1, kind: input, shape index: {}]
  %s2 = inlined_call_operand.hbm [shape: f32[2,4,8,128], index: 2, kind: output, shape index: {}]
  %s3 = sld [smem:[#allocation0]]
  $region49: #{tpu_custom_call.1} parent=0
    _
  %s5 = ssub.s32 1, %s3
  %s6 = scalar_select 0, %s5, %s3
  $region1: #{tpu_custom_call.1} parent=0
    #allocation2 [shape = 'u8[2048]{0}', space=smem, size = 0x800, scoped, tag = 'input window, operand 0, single buffered']
    #allocation3 [shape = 's32[2]{0}', space=sflag, size = 0x8, scoped, tag = 'scoped memory for tpu_custom_call.1']
    #allocation4 [shape = 's32[2]{0}', space=sflag, size = 0x8, scoped, tag = 'scoped memory for tpu_custom_call.1']
    #allocation5 [shape = 's32[2]{0}', space=sflag, size = 0x8, scoped, tag = 'scoped memory for tpu_custom_call.1']
    #allocation6 [shape = 'u8[8192]{0}', space=vmem, size = 0x2000, scoped, tag = 'input window, operand 1']
    #allocation7 [shape = 'u8[8192]{0}', space=vmem, size = 0x2000, scoped, tag = 'output window, operand 0']
    %7 = vsyncpa [#allocation5], 0
    %8 = vsyncpa [#allocation3], 0
    %s9 = scalar_lea.sflag [#allocation3], 1
    %10 = vsyncpa %s9, 0
    %11 = vsyncpa [#allocation4], 0
    %s12 = scalar_lea.sflag [#allocation4], 1
    %13 = vsyncpa %s12, 0
    loop: start=0, step=1, limit=10
    $region2: #{tpu_custom_call.1} parent=1 // loop_pre_header
      _
    $region3: #{tpu_custom_call.1} parent=1 // loop_header
      %s15 = sphi 0, %s19
      %p16 = scmp.ge.s32.totalorder %s15, 10
      %s22 = sphi 0, %s41
      %s23 = sphi 0, %s37
      %s24 = sphi 0, %s33
      %s25 = sphi 0, %s22
      %s26 = sphi 0, %s23
      %s27 = sphi 0, %s24
      %s28 = sphi 0, %s25
      %s29 = sphi 0, %s26
      %s30 = sphi 0, %s27
      %s42 = sphi 0, %s42
      %s44 = sphi 0, %s42
      %s45 = sphi 0, %s44
      %s59 = sphi 0, %s45
      %s69 = sphi 0, %s71
      %s72 = sphi 0, %s69
      %s73 = sphi 0, %s72
      %s89 = sphi 0, %s73
      %s99 = sphi 0, %s101
      %s102 = sphi 0, %s99
      %s103 = sphi 0, %s102
      %s119 = sphi 0, %s103
    $region4: #{tpu_custom_call.1} parent=1 // loop_header_branch
      %18 = sbr.rel (%p16) target = $region8
    $region5: #{tpu_custom_call.1} parent=1 // loop_body
      %s20 = ssub.s32 %s15, 1
      %s21 = ssub.s32 %s15, 2
      %s31 = sadd.s32 1, %s24
      %p32 = scmp.ge.s32.totalorder %s31, 1
      %s33 = scalar_select %p32, 0, %s31
      %s34 = sadd.s32 1, %s23
      %s35 = scalar_select %p32, %s34, %s23
      %p36 = scmp.ge.s32.totalorder %s35, 4
      %s37 = scalar_select %p36, 0, %s35
      %s38 = sadd.s32 1, %s22
      %s39 = scalar_select %p36, %s38, %s22
      %p40 = scmp.ge.s32.totalorder %s39, 2
      %s41 = scalar_select %p40, 0, %s39
      %s43 = sadd.s32 %s42, 1
      %p46 = scmp.eq.s32.totalorder %s15, 7
      %p47 = scmp.ne.s32.totalorder %s42, %s44
      %p48 = scmp.eq.s32.totalorder %s15, 0
      %p49 = por %p47, %p48
      %p50 = scmp.ne.s32.totalorder %s42, %s44
      %p51 = scmp.eq.s32.totalorder %s20, 7
      %p52 = por %p50, %p51
      %p53 = scmp.ne.s32.totalorder %s44, %s45
      %p54 = scmp.eq.s32.totalorder %s20, 0
      %p55 = por %p53, %p54
      %p56 = scmp.ne.s32.totalorder %s44, %s45
      %p57 = scmp.eq.s32.totalorder %s21, 7
      %p58 = por %p56, %p57
      %p60 = scmp.ne.s32.totalorder %s45, %s59
      %p61 = scmp.eq.s32.totalorder %s21, 0
      %p62 = por %p60, %p61
      %s63 = ssub.s32 %s22, %s41
      %s64 = ssub.s32 %s23, %s37
      %s65 = sor.u32 %s63, %s64
      %s66 = ssub.s32 %s24, %s33
      %s67 = sor.u32 %s65, %s66
      %p68 = scmp.eq.s32.totalorder %s67, 0
      %s70 = sadd.s32 %s69, 1
      %s71 = scalar_select %p68, %s69, %s70
      %p74 = pneg %p68
      %p75 = scmp.eq.s32.totalorder %s15, 7
      %p76 = por %p74, %p75
      %p77 = scmp.ne.s32.totalorder %s69, %s72
      %p78 = scmp.eq.s32.totalorder %s15, 0
      %p79 = por %p77, %p78
      %p80 = scmp.ne.s32.totalorder %s69, %s72
      %p81 = scmp.eq.s32.totalorder %s20, 7
      %p82 = por %p80, %p81
      %p83 = scmp.ne.s32.totalorder %s72, %s73
      %p84 = scmp.eq.s32.totalorder %s20, 0
      %p85 = por %p83, %p84
      %p86 = scmp.ne.s32.totalorder %s72, %s73
      %p87 = scmp.eq.s32.totalorder %s21, 7
      %p88 = por %p86, %p87
      %p90 = scmp.ne.s32.totalorder %s73, %s89
      %p91 = scmp.eq.s32.totalorder %s21, 0
      %p92 = por %p90, %p91
      %s93 = ssub.s32 %s22, %s41
      %s94 = ssub.s32 %s23, %s37
      %s95 = sor.u32 %s93, %s94
      %s96 = ssub.s32 %s24, %s33
      %s97 = sor.u32 %s95, %s96
      %p98 = scmp.eq.s32.totalorder %s97, 0
      %s100 = sadd.s32 %s99, 1
      %s101 = scalar_select %p98, %s99, %s100
      %p104 = pneg %p98
      %p105 = scmp.eq.s32.totalorder %s15, 7
      %p106 = por %p104, %p105
      %p107 = scmp.ne.s32.totalorder %s99, %s102
      %p108 = scmp.eq.s32.totalorder %s15, 0
      %p109 = por %p107, %p108
      %p110 = scmp.ne.s32.totalorder %s99, %s102
      %p111 = scmp.eq.s32.totalorder %s20, 7
      %p112 = por %p110, %p111
      %p113 = scmp.ne.s32.totalorder %s102, %s103
      %p114 = scmp.eq.s32.totalorder %s20, 0
      %p115 = por %p113, %p114
      %p116 = scmp.ne.s32.totalorder %s102, %s103
      %p117 = scmp.eq.s32.totalorder %s21, 7
      %p118 = por %p116, %p117
      %p120 = scmp.ne.s32.totalorder %s103, %s119
      %p121 = scmp.eq.s32.totalorder %s21, 0
      %p122 = por %p120, %p121
      %p123 = scmp.le.s32.totalorder 1, %s15
      %p124 = scmp.lt.s32.totalorder %s15, 9
      %p125 = pnand %p123, %p124
      %p126 = pneg %p125
      // Predicated region
      $region9: #{tpu_custom_call.1} parent=5 // pred_check
        _
      $region10: #{tpu_custom_call.1} parent=5 // pred_check_branch
        %128 = sbr.rel (%p125) target = $region12
      $region11: #{tpu_custom_call.1} parent=5 // pred_region
        %s129 = ssub.s32 %s15, 1
        // Predicated region
        $region13: #{tpu_custom_call.1} parent=11 // pred_check
          %p130 = pneg %p55
        $region14: #{tpu_custom_call.1} parent=11 // pred_check_branch
          %132 = sbr.rel (%p130) target = $region16
        $region15: #{tpu_custom_call.1} parent=11 // pred_region
          %s134 = ssub.s32 64, 64
          %135 = vsyncadd [#allocation5], %s134
          %138 = dma.hbm_to_smem %s0, 64, [#allocation2], [#allocation5]
        $region16: #{tpu_custom_call.1} parent=11 // pred_fallthru
          _
      $region12: #{tpu_custom_call.1} parent=5 // pred_fallthru
        _
      %p139 = scmp.lt.s32.totalorder %s15, 8
      // Predicated region
      $region17: #{tpu_custom_call.1} parent=5 // pred_check
        %p140 = pneg %p139
      $region18: #{tpu_custom_call.1} parent=5 // pred_check_branch
        %142 = sbr.rel (%p140) target = $region20
      $region19: #{tpu_custom_call.1} parent=5 // pred_region
        // Predicated region
        $region21: #{tpu_custom_call.1} parent=19 // pred_check
          %p143 = pneg %p79
        $region22: #{tpu_custom_call.1} parent=19 // pred_check_branch
          %145 = sbr.rel (%p143) target = $region24
        $region23: #{tpu_custom_call.1} parent=19 // pred_region
          %s146 = sand.u32 %s69, 1
          %s147 = scalar_lea.sflag [#allocation3], %s146
          %s148 = sand.u32 %s69, 1
          %s149 = smul.addr %s148, 8
          %s150 = scalar_lea.vmem [#allocation6], %s149
          %s152 = ssub.s32 128, 128
          %153 = vsyncadd %s147, %s152
          %s154 = sadd.s32 %s24, %s23
          %s155 = smul.addr %s22, 4
          %s156 = sadd.s32 %s154, %s155
          %s157 = smul.addr %s156, 128
          %s158 = scalar_lea.hbm %s1, %s157
          %s160 = sshll.u32 %s150, 4
          %s161 = int_to_ptr.vmem [resolvable:$true] %s160
          %163 = dma.hbm_to_vmem [thread:$0]  %s158, 128, %s161, %s147
        $region24: #{tpu_custom_call.1} parent=19 // pred_fallthru
          _
      $region20: #{tpu_custom_call.1} parent=5 // pred_fallthru
        _
      %p164 = scmp.le.s32.totalorder 1, %s15
      %p165 = scmp.lt.s32.totalorder %s15, 9
      %p166 = pnand %p164, %p165
      %p167 = pneg %p166
      // Predicated region
      $region25: #{tpu_custom_call.1} parent=5 // pred_check
        _
      $region26: #{tpu_custom_call.1} parent=5 // pred_check_branch
        %169 = sbr.rel (%p166) target = $region28
      $region27: #{tpu_custom_call.1} parent=5 // pred_region
        %s170 = ssub.s32 %s15, 1
        // Predicated region
        $region29: #{tpu_custom_call.1} parent=27 // pred_check
          %p171 = pneg %p55
        $region30: #{tpu_custom_call.1} parent=27 // pred_check_branch
          %173 = sbr.rel (%p171) target = $region32
        $region31: #{tpu_custom_call.1} parent=27 // pred_region
          %174 = dma.done [#allocation5], 64
        $region32: #{tpu_custom_call.1} parent=27 // pred_fallthru
          _
        %s175 = sand.u32 %s72, 1
        %s176 = scalar_lea.sflag [#allocation3], %s175
        %s177 = sand.u32 %s72, 1
        %s178 = smul.addr %s177, 8
        %s179 = scalar_lea.vmem [#allocation6], %s178
        // Predicated region
        $region33: #{tpu_custom_call.1} parent=27 // pred_check
          %p180 = pneg %p85
        $region34: #{tpu_custom_call.1} parent=27 // pred_check_branch
          %182 = sbr.rel (%p180) target = $region36
        $region35: #{tpu_custom_call.1} parent=27 // pred_region
          %183 = dma.done %s176, 128
        $region36: #{tpu_custom_call.1} parent=27 // pred_fallthru
          _
        %184 = sfence
        %p185 = pneg %p55
        %p186 = pneg %p52
        %s187 = sand.u32 %s72, 1
        %s188 = scalar_lea.sflag [#allocation3], %s187
        %s189 = sand.u32 %s72, 1
        %s190 = smul.addr %s189, 8
        %s191 = scalar_lea.vmem [#allocation6], %s190
        %p192 = pneg %p85
        %p193 = pneg %p82
        %p194 = pneg %p115
        %p195 = pneg %p112
        %s196 = sand.u32 %s102, 1
        %s197 = scalar_lea.sflag [#allocation4], %s196
        %s198 = sand.u32 %s102, 1
        %s199 = smul.addr %s198, 8
        %s200 = scalar_lea.vmem [#allocation7], %s199
        %v201 = vld [vmem:[%s179] sm:$0xff]
        %v202 = vmul.f32 %v201, 2.5
        %v203 = vmax.f32 %v202, -10.0
        %v204 = vmin.f32 %v203, 9.0
        %v205 = vfloor.f32 %v204
        %v206 = vsub.f32 %v202, %v205
        %s207 = smul.u32 %s26, 128
        %s208 = sld [smem:[#allocation2 + %s207]]
        %s209 = sadd.s32 %s207, 1
        %s210 = sld [smem:[#allocation2 + %s209]]
        %s211 = ssub.f32 %s210, %s208
        %v212 = vstv %s211
        %v213 = vmul.f32 %v206, %v212
        %v214 = vstv %s208
        %v215 = vadd.f32 %v214, %v213
        %s216 = sadd.s32 %s207, 2
        %s217 = sld [smem:[#allocation2 + %s216]]
        %s218 = ssub.f32 %s217, %s210
        %vm219 = vcmp.eq.f32.partialorder %v205, -9.0
        %v220 = vstv %s218
        %v221 = vmul.f32 %v206, %v220
        %v222 = vstv %s210
        %v223 = vadd.f32 %v222, %v221
        %v224 = vsel %vm219, %v223, %v215
        %s225 = sadd.s32 %s207, 3
        %s226 = sld [smem:[#allocation2 + %s225]]
        %s227 = ssub.f32 %s226, %s217
        %vm228 = vcmp.eq.f32.partialorder %v205, -8.0
        %v229 = vstv %s227
        %v230 = vmul.f32 %v206, %v229
        %v231 = vstv %s217
        %v232 = vadd.f32 %v231, %v230
        %v233 = vsel %vm228, %v232, %v224
        %s234 = sadd.s32 %s207, 4
        %s235 = sld [smem:[#allocation2 + %s234]]
        %s236 = ssub.f32 %s235, %s226
        %vm237 = vcmp.eq.f32.partialorder %v205, -7.0
        %v238 = vstv %s236
        %v239 = vmul.f32 %v206, %v238
        %v240 = vstv %s226
        %v241 = vadd.f32 %v240, %v239
        %v242 = vsel %vm237, %v241, %v233
        %s243 = sadd.s32 %s207, 5
        %s244 = sld [smem:[#allocation2 + %s243]]
        %s245 = ssub.f32 %s244, %s235
        %vm246 = vcmp.eq.f32.partialorder %v205, -6.0
        %v247 = vstv %s245
        %v248 = vmul.f32 %v206, %v247
        %v249 = vstv %s235
        %v250 = vadd.f32 %v249, %v248
        %v251 = vsel %vm246, %v250, %v242
        %s252 = sadd.s32 %s207, 6
        %s253 = sld [smem:[#allocation2 + %s252]]
        %s254 = ssub.f32 %s253, %s244
        %vm255 = vcmp.eq.f32.partialorder %v205, -5.0
        %v256 = vstv %s254
        %v257 = vmul.f32 %v206, %v256
        %v258 = vstv %s244
        %v259 = vadd.f32 %v258, %v257
        %v260 = vsel %vm255, %v259, %v251
        %s261 = sadd.s32 %s207, 7
        %s262 = sld [smem:[#allocation2 + %s261]]
        %s263 = ssub.f32 %s262, %s253
        %vm264 = vcmp.eq.f32.partialorder %v205, -4.0
        %v265 = vstv %s263
        %v266 = vmul.f32 %v206, %v265
        %v267 = vstv %s253
        %v268 = vadd.f32 %v267, %v266
        %v269 = vsel %vm264, %v268, %v260
        %s270 = sadd.s32 %s207, 8
        %s271 = sld [smem:[#allocation2 + %s270]]
        %s272 = ssub.f32 %s271, %s262
        %vm273 = vcmp.eq.f32.partialorder %v205, -3.0
        %v274 = vstv %s272
        %v275 = vmul.f32 %v206, %v274
        %v276 = vstv %s262
        %v277 = vadd.f32 %v276, %v275
        %v278 = vsel %vm273, %v277, %v269
        %s279 = sadd.s32 %s207, 9
        %s280 = sld [smem:[#allocation2 + %s279]]
        %s281 = ssub.f32 %s280, %s271
        %vm282 = vcmp.eq.f32.partialorder %v205, -2.0
        %v283 = vstv %s281
        %v284 = vmul.f32 %v206, %v283
        %v285 = vstv %s271
        %v286 = vadd.f32 %v285, %v284
        %v287 = vsel %vm282, %v286, %v278
        %s288 = sadd.s32 %s207, 10
        %s289 = sld [smem:[#allocation2 + %s288]]
        %s290 = ssub.f32 %s289, %s280
        %vm291 = vcmp.eq.f32.partialorder %v205, -1.0
        %v292 = vstv %s290
        %v293 = vmul.f32 %v206, %v292
        %v294 = vstv %s280
        %v295 = vadd.f32 %v294, %v293
        %v296 = vsel %vm291, %v295, %v287
        %s297 = sadd.s32 %s207, 11
        %s298 = sld [smem:[#allocation2 + %s297]]
        %s299 = ssub.f32 %s298, %s289
        %vm300 = vcmp.eq.f32.partialorder %v205, 0.0
        %v301 = vstv %s299
        %v302 = vmul.f32 %v206, %v301
        %v303 = vstv %s289
        %v304 = vadd.f32 %v303, %v302
        %v305 = vsel %vm300, %v304, %v296
        %s306 = sadd.s32 %s207, 12
        %s307 = sld [smem:[#allocation2 + %s306]]
        %s308 = ssub.f32 %s307, %s298
        %vm309 = vcmp.eq.f32.partialorder %v205, 1.0
        %v310 = vstv %s308
        %v311 = vmul.f32 %v206, %v310
        %v312 = vstv %s298
        %v313 = vadd.f32 %v312, %v311
        %v314 = vsel %vm309, %v313, %v305
        %s315 = sadd.s32 %s207, 13
        %s316 = sld [smem:[#allocation2 + %s315]]
        %s317 = ssub.f32 %s316, %s307
        %vm318 = vcmp.eq.f32.partialorder %v205, 2.0
        %v319 = vstv %s317
        %v320 = vmul.f32 %v206, %v319
        %v321 = vstv %s307
        %v322 = vadd.f32 %v321, %v320
        %v323 = vsel %vm318, %v322, %v314
        %s324 = sadd.s32 %s207, 14
        %s325 = sld [smem:[#allocation2 + %s324]]
        %s326 = ssub.f32 %s325, %s316
        %vm327 = vcmp.eq.f32.partialorder %v205, 3.0
        %v328 = vstv %s326
        %v329 = vmul.f32 %v206, %v328
        %v330 = vstv %s316
        %v331 = vadd.f32 %v330, %v329
        %v332 = vsel %vm327, %v331, %v323
        %s333 = sadd.s32 %s207, 15
        %s334 = sld [smem:[#allocation2 + %s333]]
        %s335 = ssub.f32 %s334, %s325
        %vm336 = vcmp.eq.f32.partialorder %v205, 4.0
        %v337 = vstv %s335
        %v338 = vmul.f32 %v206, %v337
        %v339 = vstv %s325
        %v340 = vadd.f32 %v339, %v338
        %v341 = vsel %vm336, %v340, %v332
        %s342 = sadd.s32 %s207, 16
        %s343 = sld [smem:[#allocation2 + %s342]]
        %s344 = ssub.f32 %s343, %s334
        %vm345 = vcmp.eq.f32.partialorder %v205, 5.0
        %v346 = vstv %s344
        %v347 = vmul.f32 %v206, %v346
        %v348 = vstv %s334
        %v349 = vadd.f32 %v348, %v347
        %v350 = vsel %vm345, %v349, %v341
        %s351 = sadd.s32 %s207, 17
        %s352 = sld [smem:[#allocation2 + %s351]]
        %s353 = ssub.f32 %s352, %s343
        %vm354 = vcmp.eq.f32.partialorder %v205, 6.0
        %v355 = vstv %s353
        %v356 = vmul.f32 %v206, %v355
        %v357 = vstv %s343
        %v358 = vadd.f32 %v357, %v356
        %v359 = vsel %vm354, %v358, %v350
        %s360 = sadd.s32 %s207, 18
        %s361 = sld [smem:[#allocation2 + %s360]]
        %s362 = ssub.f32 %s361, %s352
        %vm363 = vcmp.eq.f32.partialorder %v205, 7.0
        %v364 = vstv %s362
        %v365 = vmul.f32 %v206, %v364
        %v366 = vstv %s352
        %v367 = vadd.f32 %v366, %v365
        %v368 = vsel %vm363, %v367, %v359
        %s369 = sadd.s32 %s207, 19
        %s370 = sld [smem:[#allocation2 + %s369]]
        %s371 = ssub.f32 %s370, %s361
        %vm372 = vcmp.eq.f32.partialorder %v205, 8.0
        %v373 = vstv %s371
        %v374 = vmul.f32 %v206, %v373
        %v375 = vstv %s361
        %v376 = vadd.f32 %v375, %v374
        %v377 = vsel %vm372, %v376, %v368
        %s378 = sadd.s32 %s207, 20
        %s379 = sld [smem:[#allocation2 + %s378]]
        %s380 = ssub.f32 %s379, %s370
        %vm381 = vcmp.eq.f32.partialorder %v205, 9.0
        %v382 = vstv %s380
        %v383 = vmul.f32 %v206, %v382
        %v384 = vstv %s370
        %v385 = vadd.f32 %v384, %v383
        %v386 = vsel %vm381, %v385, %v377
        %387 = vst [vmem:[%s200] sm:$0xff] %v386
        %s388 = sand.u32 %s102, 1
        %s389 = scalar_lea.sflag [#allocation4], %s388
        %s390 = sand.u32 %s102, 1
        %s391 = smul.addr %s390, 8
        %s392 = scalar_lea.vmem [#allocation7], %s391
        // Predicated region
        $region37: #{tpu_custom_call.1} parent=27 // pred_check
          %p393 = pneg %p112
        $region38: #{tpu_custom_call.1} parent=27 // pred_check_branch
          %395 = sbr.rel (%p393) target = $region40
        $region39: #{tpu_custom_call.1} parent=27 // pred_region
          %s397 = ssub.s32 128, 128
          %398 = vsyncadd %s389, %s397
          %s399 = sadd.s32 %s27, %s26
          %s400 = smul.addr %s25, 4
          %s401 = sadd.s32 %s399, %s400
          %s402 = smul.addr %s401, 128
          %s403 = scalar_lea.hbm %s2, %s402
          %s405 = sshll.u32 %s392, 4
          %s406 = int_to_ptr.vmem [resolvable:$true] %s405
          %408 = dma.vmem_to_hbm [thread:$0]  %s406, 128, %s403, %s389
        $region40: #{tpu_custom_call.1} parent=27 // pred_fallthru
          _
      $region28: #{tpu_custom_call.1} parent=5 // pred_fallthru
        _
      %p409 = scmp.le.s32.totalorder 2, %s15
      // Predicated region
      $region41: #{tpu_custom_call.1} parent=5 // pred_check
        %p410 = pneg %p409
      $region42: #{tpu_custom_call.1} parent=5 // pred_check_branch
        %412 = sbr.rel (%p410) target = $region44
      $region43: #{tpu_custom_call.1} parent=5 // pred_region
        %s413 = ssub.s32 %s15, 2
        // Predicated region
        $region45: #{tpu_custom_call.1} parent=43 // pred_check
          %p414 = pneg %p118
        $region46: #{tpu_custom_call.1} parent=43 // pred_check_branch
          %416 = sbr.rel (%p414) target = $region48
        $region47: #{tpu_custom_call.1} parent=43 // pred_region
          %s417 = sand.u32 %s103, 1
          %s418 = scalar_lea.sflag [#allocation4], %s417
          %s419 = sand.u32 %s103, 1
          %s420 = smul.addr %s419, 8
          %s421 = scalar_lea.vmem [#allocation7], %s420
          %422 = dma.done %s418, 128
        $region48: #{tpu_custom_call.1} parent=43 // pred_fallthru
          _
      $region44: #{tpu_custom_call.1} parent=5 // pred_fallthru
        _
    $region6: #{tpu_custom_call.1} parent=1 // loop_footer
      %s19 = sadd.s32 1, %s15
    $region7: #{tpu_custom_call.1} parent=1 // loop_footer_branch
      %14 = sbr.rel target = $region3
    $region8: #{tpu_custom_call.1} parent=1 // loop_exit
      _
    %423 = vsyncpa [#allocation3], 1
    %s424 = scalar_lea.sflag [#allocation3], 1
    %425 = vsyncpa %s424, 1
    %426 = vsyncpa [#allocation4], 1
    %s427 = scalar_lea.sflag [#allocation4], 1
    %428 = vsyncpa %s427, 1
    %429 = vsyncpa [#allocation5], 1
    %s430 = scalar_lea.sflag [#allocation5], 1
    %431 = vsyncpa %s430, 1

</llo_original>
